<compile_context>
chip_gen: v7x
topology: tpu7x:2x2x1
jax: 0.10.0
libtpu: 0.0.40
codegen_flags: <defaults>
</compile_context>

<pallas_src>
import functools

import jax
import jax.numpy as jnp
from jax.experimental import pallas as pl
from jax.experimental.pallas import tpu as pltpu  # noqa: F401  (TPU backend)


def _has_bf16_valu() -> bool:
    """True on chips with a bf16 VALU (v6e / v7x); conservative False otherwise."""
    try:
        kind = jax.devices()[0].device_kind.lower()
    except Exception:
        return False
    return any(tag in kind for tag in ("v6", "v7"))


def se_gate_kernel(wb_ref, s1_ref, x_ref, o_ref, *, upcast_activation):
    # Gate on VPU + XLU + EUP: [336,15] * [1,15] broadcast, reduce along lanes (bias is
    # folded into the last column of wb / the trailing 1.0 of s1), then sigmoid.
    wb = wb_ref[...].astype(jnp.float32)
    s1 = s1_ref[...].astype(jnp.float32)
    gate = jax.nn.sigmoid(jnp.sum(wb * s1, axis=1, keepdims=True))  # [C, 1], f32

    if upcast_activation:
        # v5-class path (no bf16 VALU) -- also the trivial no-op-cast path for f32 inputs.
        o_ref[...] = (x_ref[...].astype(jnp.float32) * gate).astype(o_ref.dtype)
    else:
        # Native low-precision multiply on chips with bf16 VALU (v6e / v7x).
        o_ref[...] = x_ref[...] * gate.astype(x_ref.dtype)


@functools.partial(jax.jit, static_argnames=("donate",))
def se_gate(x160, x157, weight, bias, *, donate=False):
    """x160: [1, Cin, 1, 1], x157: [1, Cout, H, W], weight: [Cout, Cin, 1, 1], bias: [Cout].

    Set donate=True only if the caller actually donates x157's buffer; otherwise the
    must-alias would force XLA to insert a defensive copy of the activation.
    """
    _, cin, _, _ = x160.shape
    n, cout, h, w = x157.shape
    hw = h * w

    # Fold bias into the weight: wb [Cout, Cin+1], s1 [1, Cin+1] with a trailing 1.
    wmat = weight.reshape(cout, cin)
    wb = jnp.concatenate([wmat, bias.reshape(cout, 1).astype(wmat.dtype)], axis=1)
    s = x160.reshape(1, cin)
    s1 = jnp.concatenate([s, jnp.ones((1, 1), dtype=s.dtype)], axis=1)

    x = x157.reshape(cout, hw)  # keep input dtype; dominant tensor

    # Use the f32-upcast multiply unless the activation is bf16 on a chip with bf16 VALU.
    upcast_activation = not (x.dtype == jnp.bfloat16 and _has_bf16_valu())

    x_bytes = x.size * x.dtype.itemsize
    small_bytes = wb.size * wb.dtype.itemsize + s1.size * s1.dtype.itemsize
    cost = pl.CostEstimate(
        flops=cout * hw + 2 * cout * (cin + 1),
        transcendentals=cout,
        bytes_accessed=2 * x_bytes + small_bytes,
    )

    out = pl.pallas_call(
        functools.partial(se_gate_kernel, upcast_activation=upcast_activation),
        out_shape=jax.ShapeDtypeStruct((cout, hw), x157.dtype),
        in_specs=[
            pl.BlockSpec((cout, cin + 1), lambda: (0, 0)),
            pl.BlockSpec((1, cin + 1), lambda: (0, 0)),
            pl.BlockSpec((cout, hw), lambda: (0, 0)),
        ],
        out_specs=pl.BlockSpec((cout, hw), lambda: (0, 0)),
        # Only alias when the caller donates x157; otherwise XLA inserts a copy.
        input_output_aliases=({2: 0} if donate else {}),
        cost_estimate=cost,
    )(wb, s1, x)

    return out.reshape(n, cout, h, w)


def reference(x160, x157, weight, bias):
    # plain-JAX reference of the PyTorch forward (Conv2d 1x1 -> Sigmoid -> mul)
    gate = jnp.einsum(
        "oi,i->o",
        weight.reshape(weight.shape[0], weight.shape[1]).astype(jnp.float32),
        x160.reshape(-1).astype(jnp.float32),
    ) + bias.astype(jnp.float32)
    gate = jax.nn.sigmoid(gate)
    return x157.astype(jnp.float32) * gate[None, :, None, None]


if __name__ == "__main__":
    key = jax.random.PRNGKey(0)
    k1, k2, k3, k4 = jax.random.split(key, 4)

    cin, cout, h, w = 14, 336, 14, 14
    x160 = jax.random.normal(k1, (1, cin, 1, 1), dtype=jnp.float32)
    x157 = jax.random.normal(k2, (1, cout, h, w), dtype=jnp.float32)
    # deterministic parameter init (mimics Conv2d(14, 336, 1) parameter shapes)
    weight = jax.random.normal(k3, (cout, cin, 1, 1), dtype=jnp.float32) * 0.1
    bias = jax.random.normal(k4, (cout,), dtype=jnp.float32) * 0.1

    ref = reference(x160, x157, weight, bias)

    # f32, non-donated path (default).
    out = jax.block_until_ready(se_gate(x160, x157, weight, bias))
    assert out.shape == (1, cout, h, w)
    assert jnp.allclose(out, ref, atol=1e-5, rtol=1e-5)

    # f32, donated-alias path.
    out_d = jax.block_until_ready(se_gate(x160, x157, weight, bias, donate=True))
    assert jnp.allclose(out_d, ref, atol=1e-5, rtol=1e-5)

    # bf16 activation path (native bf16 multiply on v6e/v7x, f32 upcast on v5-class).
    out_bf = jax.block_until_ready(
        se_gate(x160, x157.astype(jnp.bfloat16), weight, bias)
    )
    assert out_bf.dtype == jnp.bfloat16
    ref_bf = reference(x160, x157.astype(jnp.bfloat16).astype(jnp.float32), weight, bias)
    assert jnp.allclose(out_bf.astype(jnp.float32), ref_bf, atol=2e-2, rtol=2e-2)

    print("KERNEL_OK")
</pallas_src>

<mosaic_0001>
module attributes {stable_mosaic.version = 11 : i64} {
  func.func @se_gate_kernel(%arg0: memref<336x15xf32, #tpu.memory_space<vmem>>, %arg1: memref<1x15xf32, #tpu.memory_space<vmem>>, %arg2: memref<336x196xf32, #tpu.memory_space<vmem>>, %arg3: memref<336x196xf32, #tpu.memory_space<vmem>>) attributes {dimension_semantics = [], scalar_prefetch = 0 : i64, scratch_operands = 0 : i64, tpu.core_type = #tpu.core_type<tc>} {
    %c0 = arith.constant 0 : index
    %c0_0 = arith.constant 0 : index
    %0 = vector.load %arg0[%c0, %c0_0] : memref<336x15xf32, #tpu.memory_space<vmem>>, vector<336x15xf32>
    %c0_1 = arith.constant 0 : index
    %c0_2 = arith.constant 0 : index
    %1 = vector.load %arg1[%c0_1, %c0_2] : memref<1x15xf32, #tpu.memory_space<vmem>>, vector<1x15xf32>
    %2 = vector.broadcast %1 : vector<1x15xf32> to vector<336x15xf32>
    %3 = arith.mulf %0, %2 : vector<336x15xf32>
    %cst = arith.constant dense<0.000000e+00> : vector<336xf32>
    %4 = vector.multi_reduction <add>, %3, %cst [1] : vector<336x15xf32> to vector<336xf32>
    %5 = vector.shape_cast %4 : vector<336xf32> to vector<336x1xf32>
    %6 = arith.negf %5 : vector<336x1xf32>
    %7 = math.exp %6 : vector<336x1xf32>
    %cst_3 = arith.constant 1.000000e+00 : f32
    %8 = vector.broadcast %cst_3 : f32 to vector<336x1xf32>
    %9 = arith.addf %8, %7 : vector<336x1xf32>
    %10 = arith.divf %8, %9 : vector<336x1xf32>
    %c0_4 = arith.constant 0 : index
    %c0_5 = arith.constant 0 : index
    %11 = vector.load %arg2[%c0_4, %c0_5] : memref<336x196xf32, #tpu.memory_space<vmem>>, vector<336x196xf32>
    %12 = vector.broadcast %10 : vector<336x1xf32> to vector<336x196xf32>
    %13 = arith.mulf %11, %12 : vector<336x196xf32>
    %c0_6 = arith.constant 0 : index
    %c0_7 = arith.constant 0 : index
    %14 = vector.load %arg3[%c0_6, %c0_7] : memref<336x196xf32, #tpu.memory_space<vmem>>, vector<336x196xf32>
    tpu.vector_store %arg3[%c0_6, %c0_7], %13 {strides = array<i32>} : memref<336x196xf32, #tpu.memory_space<vmem>>, vector<336x196xf32>,
    return
  }
}

</mosaic_0001>

<llo_original>
// kernel: se_gate.1
$region0: #{se_gate.1}
  #allocation0 [shape = 'u32[]', space=smem, size = 0x4, offset = 0x4, fixed_abs, tag = 'smem constant byte address 0x4 - core index']
  #allocation1 [shape = 'u32[144,128]{1,0:T(1,128)}', space=vmem, size = 0x12000, scoped, tag = 'internal scratch']
  %s0 = inlined_call_operand.vmem [shape: f32[336,15], index: 0, kind: input, shape index: {}]
  %s1 = inlined_call_operand.vmem [shape: f32[1,15], index: 1, kind: input, shape index: {}]
  %s2 = inlined_call_operand.vmem [shape: f32[336,196], index: 2, kind: input, shape index: {}]
  %s3 = inlined_call_operand.vmem [shape: f32[336,196], index: 3, kind: output, shape index: {}]
  %s4 = sld [smem:[#allocation0]]
  $region22: #{se_gate.1} parent=0
    _
  %s6 = ssub.s32 1, %s4
  %s7 = scalar_select 0, %s6, %s4
  // Predicated region
  $region2: #{se_gate.1} parent=0 // pred_check
    _
  $region3: #{se_gate.1} parent=0 // pred_check_branch
    %9 = sbr.rel (0) target = $region5
  $region4: #{se_gate.1} parent=0 // pred_region
    _
  $region5: #{se_gate.1} parent=0 // pred_fallthru
    _
  // Predicated region
  $region6: #{se_gate.1} parent=0 // pred_check
    _
  $region7: #{se_gate.1} parent=0 // pred_check_branch
    %11 = sbr.rel (0) target = $region9
  $region8: #{se_gate.1} parent=0 // pred_region
    _
  $region9: #{se_gate.1} parent=0 // pred_fallthru
    _
  // Predicated region
  $region10: #{se_gate.1} parent=0 // pred_check
    _
  $region11: #{se_gate.1} parent=0 // pred_check_branch
    %13 = sbr.rel (0) target = $region13
  $region12: #{se_gate.1} parent=0 // pred_region
    _
  $region13: #{se_gate.1} parent=0 // pred_fallthru
    _
  %v14 = vld [vmem:[%s0] sm:$0xff]
  %v15 = vld [vmem:[%s0 + $0x8] sm:$0xff]
  %v16 = vld [vmem:[%s0 + $0x10] sm:$0xff]
  %v17 = vld [vmem:[%s0 + $0x18] sm:$0xff]
  %v18 = vld [vmem:[%s0 + $0x20] sm:$0xff]
  %v19 = vld [vmem:[%s0 + $0x28] sm:$0xff]
  %v20 = vld [vmem:[%s0 + $0x30] sm:$0xff]
  %v21 = vld [vmem:[%s0 + $0x38] sm:$0xff]
  %v22 = vld [vmem:[%s0 + $0x40] sm:$0xff]
  %v23 = vld [vmem:[%s0 + $0x48] sm:$0xff]
  %v24 = vld [vmem:[%s0 + $0x50] sm:$0xff]
  %v25 = vld [vmem:[%s0 + $0x58] sm:$0xff]
  %v26 = vld [vmem:[%s0 + $0x60] sm:$0xff]
  %v27 = vld [vmem:[%s0 + $0x68] sm:$0xff]
  %v28 = vld [vmem:[%s0 + $0x70] sm:$0xff]
  %v29 = vld [vmem:[%s0 + $0x78] sm:$0xff]
  %v30 = vld [vmem:[%s0 + $0x80] sm:$0xff]
  %v31 = vld [vmem:[%s0 + $0x88] sm:$0xff]
  %v32 = vld [vmem:[%s0 + $0x90] sm:$0xff]
  %v33 = vld [vmem:[%s0 + $0x98] sm:$0xff]
  %v34 = vld [vmem:[%s0 + $0xa0] sm:$0xff]
  %v35 = vld [vmem:[%s0 + $0xa8] sm:$0xff]
  %v36 = vld [vmem:[%s0 + $0xb0] sm:$0xff]
  %v37 = vld [vmem:[%s0 + $0xb8] sm:$0xff]
  %v38 = vld [vmem:[%s0 + $0xc0] sm:$0xff]
  %v39 = vld [vmem:[%s0 + $0xc8] sm:$0xff]
  %v40 = vld [vmem:[%s0 + $0xd0] sm:$0xff]
  %v41 = vld [vmem:[%s0 + $0xd8] sm:$0xff]
  %v42 = vld [vmem:[%s0 + $0xe0] sm:$0xff]
  %v43 = vld [vmem:[%s0 + $0xe8] sm:$0xff]
  %v44 = vld [vmem:[%s0 + $0xf0] sm:$0xff]
  %v45 = vld [vmem:[%s0 + $0xf8] sm:$0xff]
  %v46 = vld [vmem:[%s0 + $0x100] sm:$0xff]
  %v47 = vld [vmem:[%s0 + $0x108] sm:$0xff]
  %v48 = vld [vmem:[%s0 + $0x110] sm:$0xff]
  %v49 = vld [vmem:[%s0 + $0x118] sm:$0xff]
  %v50 = vld [vmem:[%s0 + $0x120] sm:$0xff]
  %v51 = vld [vmem:[%s0 + $0x128] sm:$0xff]
  %v52 = vld [vmem:[%s0 + $0x130] sm:$0xff]
  %v53 = vld [vmem:[%s0 + $0x138] sm:$0xff]
  %v54 = vld [vmem:[%s0 + $0x140] sm:$0xff]
  %v55 = vld [vmem:[%s0 + $0x148] sm:$0xff]
  %v56 = vld [vmem:[%s1] sm:$0x1]
  %v58 = vlaneseq
  %v59 = vshrl.u32 %v58, 7
  %v60 = vsub.s32 0, %v59
  %v61 = vrot.slane %v56, %v60
  %v63 = vmul.f32 %v14, %v61
  %v64 = vmul.f32 %v15, %v61
  %v65 = vmul.f32 %v16, %v61
  %v66 = vmul.f32 %v17, %v61
  %v67 = vmul.f32 %v18, %v61
  %v68 = vmul.f32 %v19, %v61
  %v69 = vmul.f32 %v20, %v61
  %v70 = vmul.f32 %v21, %v61
  %v71 = vmul.f32 %v22, %v61
  %v72 = vmul.f32 %v23, %v61
  %v73 = vmul.f32 %v24, %v61
  %v74 = vmul.f32 %v25, %v61
  %v75 = vmul.f32 %v26, %v61
  %v76 = vmul.f32 %v27, %v61
  %v77 = vmul.f32 %v28, %v61
  %v78 = vmul.f32 %v29, %v61
  %v79 = vmul.f32 %v30, %v61
  %v80 = vmul.f32 %v31, %v61
  %v81 = vmul.f32 %v32, %v61
  %v82 = vmul.f32 %v33, %v61
  %v83 = vmul.f32 %v34, %v61
  %v84 = vmul.f32 %v35, %v61
  %v85 = vmul.f32 %v36, %v61
  %v86 = vmul.f32 %v37, %v61
  %v87 = vmul.f32 %v38, %v61
  %v88 = vmul.f32 %v39, %v61
  %v89 = vmul.f32 %v40, %v61
  %v90 = vmul.f32 %v41, %v61
  %v91 = vmul.f32 %v42, %v61
  %v92 = vmul.f32 %v43, %v61
  %v93 = vmul.f32 %v44, %v61
  %v94 = vmul.f32 %v45, %v61
  %v95 = vmul.f32 %v46, %v61
  %v96 = vmul.f32 %v47, %v61
  %v97 = vmul.f32 %v48, %v61
  %v98 = vmul.f32 %v49, %v61
  %v99 = vmul.f32 %v50, %v61
  %v100 = vmul.f32 %v51, %v61
  %v101 = vmul.f32 %v52, %v61
  %v102 = vmul.f32 %v53, %v61
  %v103 = vmul.f32 %v54, %v61
  %v104 = vmul.f32 %v55, %v61
  %vm105 = vcmask 121856
  %v106 = vsel %vm105, %v63, 0.0
  %107 = vadd.xlane.f32.xlu0 %v106
  %v108 = vpop.xlane.xlu0 %107
  %v109 = vsel %vm105, %v64, 0.0
  %110 = vadd.xlane.f32.xlu0 %v109
  %v111 = vpop.xlane.xlu0 %110
  %v112 = vsel %vm105, %v65, 0.0
  %113 = vadd.xlane.f32.xlu0 %v112
  %v114 = vpop.xlane.xlu0 %113
  %v115 = vsel %vm105, %v66, 0.0
  %116 = vadd.xlane.f32.xlu0 %v115
  %v117 = vpop.xlane.xlu0 %116
  %v118 = vsel %vm105, %v67, 0.0
  %119 = vadd.xlane.f32.xlu0 %v118
  %v120 = vpop.xlane.xlu0 %119
  %v121 = vsel %vm105, %v68, 0.0
  %122 = vadd.xlane.f32.xlu0 %v121
  %v123 = vpop.xlane.xlu0 %122
  %v124 = vsel %vm105, %v69, 0.0
  %125 = vadd.xlane.f32.xlu0 %v124
  %v126 = vpop.xlane.xlu0 %125
  %v127 = vsel %vm105, %v70, 0.0
  %128 = vadd.xlane.f32.xlu0 %v127
  %v129 = vpop.xlane.xlu0 %128
  %v130 = vsel %vm105, %v71, 0.0
  %131 = vadd.xlane.f32.xlu0 %v130
  %v132 = vpop.xlane.xlu0 %131
  %v133 = vsel %vm105, %v72, 0.0
  %134 = vadd.xlane.f32.xlu0 %v133
  %v135 = vpop.xlane.xlu0 %134
  %v136 = vsel %vm105, %v73, 0.0
  %137 = vadd.xlane.f32.xlu0 %v136
  %v138 = vpop.xlane.xlu0 %137
  %v139 = vsel %vm105, %v74, 0.0
  %140 = vadd.xlane.f32.xlu0 %v139
  %v141 = vpop.xlane.xlu0 %140
  %v142 = vsel %vm105, %v75, 0.0
  %143 = vadd.xlane.f32.xlu0 %v142
  %v144 = vpop.xlane.xlu0 %143
  %v145 = vsel %vm105, %v76, 0.0
  %146 = vadd.xlane.f32.xlu0 %v145
  %v147 = vpop.xlane.xlu0 %146
  %v148 = vsel %vm105, %v77, 0.0
  %149 = vadd.xlane.f32.xlu0 %v148
  %v150 = vpop.xlane.xlu0 %149
  %v151 = vsel %vm105, %v78, 0.0
  %152 = vadd.xlane.f32.xlu0 %v151
  %v153 = vpop.xlane.xlu0 %152
  %v154 = vsel %vm105, %v79, 0.0
  %155 = vadd.xlane.f32.xlu0 %v154
  %v156 = vpop.xlane.xlu0 %155
  %v157 = vsel %vm105, %v80, 0.0
  %158 = vadd.xlane.f32.xlu0 %v157
  %v159 = vpop.xlane.xlu0 %158
  %v160 = vsel %vm105, %v81, 0.0
  %161 = vadd.xlane.f32.xlu0 %v160
  %v162 = vpop.xlane.xlu0 %161
  %v163 = vsel %vm105, %v82, 0.0
  %164 = vadd.xlane.f32.xlu0 %v163
  %v165 = vpop.xlane.xlu0 %164
  %v166 = vsel %vm105, %v83, 0.0
  %167 = vadd.xlane.f32.xlu0 %v166
  %v168 = vpop.xlane.xlu0 %167
  %v169 = vsel %vm105, %v84, 0.0
  %170 = vadd.xlane.f32.xlu0 %v169
  %v171 = vpop.xlane.xlu0 %170
  %v172 = vsel %vm105, %v85, 0.0
  %173 = vadd.xlane.f32.xlu0 %v172
  %v174 = vpop.xlane.xlu0 %173
  %v175 = vsel %vm105, %v86, 0.0
  %176 = vadd.xlane.f32.xlu0 %v175
  %v177 = vpop.xlane.xlu0 %176
  %v178 = vsel %vm105, %v87, 0.0
  %179 = vadd.xlane.f32.xlu0 %v178
  %v180 = vpop.xlane.xlu0 %179
  %v181 = vsel %vm105, %v88, 0.0
  %182 = vadd.xlane.f32.xlu0 %v181
  %v183 = vpop.xlane.xlu0 %182
  %v184 = vsel %vm105, %v89, 0.0
  %185 = vadd.xlane.f32.xlu0 %v184
  %v186 = vpop.xlane.xlu0 %185
  %v187 = vsel %vm105, %v90, 0.0
  %188 = vadd.xlane.f32.xlu0 %v187
  %v189 = vpop.xlane.xlu0 %188
  %v190 = vsel %vm105, %v91, 0.0
  %191 = vadd.xlane.f32.xlu0 %v190
  %v192 = vpop.xlane.xlu0 %191
  %v193 = vsel %vm105, %v92, 0.0
  %194 = vadd.xlane.f32.xlu0 %v193
  %v195 = vpop.xlane.xlu0 %194
  %v196 = vsel %vm105, %v93, 0.0
  %197 = vadd.xlane.f32.xlu0 %v196
  %v198 = vpop.xlane.xlu0 %197
  %v199 = vsel %vm105, %v94, 0.0
  %200 = vadd.xlane.f32.xlu0 %v199
  %v201 = vpop.xlane.xlu0 %200
  %v202 = vsel %vm105, %v95, 0.0
  %203 = vadd.xlane.f32.xlu0 %v202
  %v204 = vpop.xlane.xlu0 %203
  %v205 = vsel %vm105, %v96, 0.0
  %206 = vadd.xlane.f32.xlu0 %v205
  %v207 = vpop.xlane.xlu0 %206
  %v208 = vsel %vm105, %v97, 0.0
  %209 = vadd.xlane.f32.xlu0 %v208
  %v210 = vpop.xlane.xlu0 %209
  %v211 = vsel %vm105, %v98, 0.0
  %212 = vadd.xlane.f32.xlu0 %v211
  %v213 = vpop.xlane.xlu0 %212
  %v214 = vsel %vm105, %v99, 0.0
  %215 = vadd.xlane.f32.xlu0 %v214
  %v216 = vpop.xlane.xlu0 %215
  %v217 = vsel %vm105, %v100, 0.0
  %218 = vadd.xlane.f32.xlu0 %v217
  %v219 = vpop.xlane.xlu0 %218
  %v220 = vsel %vm105, %v101, 0.0
  %221 = vadd.xlane.f32.xlu0 %v220
  %v222 = vpop.xlane.xlu0 %221
  %v223 = vsel %vm105, %v102, 0.0
  %224 = vadd.xlane.f32.xlu0 %v223
  %v225 = vpop.xlane.xlu0 %224
  %v226 = vsel %vm105, %v103, 0.0
  %227 = vadd.xlane.f32.xlu0 %v226
  %v228 = vpop.xlane.xlu0 %227
  %v229 = vsel %vm105, %v104, 0.0
  %230 = vadd.xlane.f32.xlu0 %v229
  %v231 = vpop.xlane.xlu0 %230
  %v232 = vxor.u32 %v108, 2147483648
  %v233 = vxor.u32 %v111, 2147483648
  %v234 = vxor.u32 %v114, 2147483648
  %v235 = vxor.u32 %v117, 2147483648
  %v236 = vxor.u32 %v120, 2147483648
  %v237 = vxor.u32 %v123, 2147483648
  %v238 = vxor.u32 %v126, 2147483648
  %v239 = vxor.u32 %v129, 2147483648
  %v240 = vxor.u32 %v132, 2147483648
  %v241 = vxor.u32 %v135, 2147483648
  %v242 = vxor.u32 %v138, 2147483648
  %v243 = vxor.u32 %v141, 2147483648
  %v244 = vxor.u32 %v144, 2147483648
  %v245 = vxor.u32 %v147, 2147483648
  %v246 = vxor.u32 %v150, 2147483648
  %v247 = vxor.u32 %v153, 2147483648
  %v248 = vxor.u32 %v156, 2147483648
  %v249 = vxor.u32 %v159, 2147483648
  %v250 = vxor.u32 %v162, 2147483648
  %v251 = vxor.u32 %v165, 2147483648
  %v252 = vxor.u32 %v168, 2147483648
  %v253 = vxor.u32 %v171, 2147483648
  %v254 = vxor.u32 %v174, 2147483648
  %v255 = vxor.u32 %v177, 2147483648
  %v256 = vxor.u32 %v180, 2147483648
  %v257 = vxor.u32 %v183, 2147483648
  %v258 = vxor.u32 %v186, 2147483648
  %v259 = vxor.u32 %v189, 2147483648
  %v260 = vxor.u32 %v192, 2147483648
  %v261 = vxor.u32 %v195, 2147483648
  %v262 = vxor.u32 %v198, 2147483648
  %v263 = vxor.u32 %v201, 2147483648
  %v264 = vxor.u32 %v204, 2147483648
  %v265 = vxor.u32 %v207, 2147483648
  %v266 = vxor.u32 %v210, 2147483648
  %v267 = vxor.u32 %v213, 2147483648
  %v268 = vxor.u32 %v216, 2147483648
  %v269 = vxor.u32 %v219, 2147483648
  %v270 = vxor.u32 %v222, 2147483648
  %v271 = vxor.u32 %v225, 2147483648
  %v272 = vxor.u32 %v228, 2147483648
  %v273 = vxor.u32 %v231, 2147483648
  %v274 = vmul.f32 %v232, 1.442695
  %v275 = vpow.pop %v274
  %v276 = vmul.f32 %v233, 1.442695
  %v277 = vpow.pop %v276
  %v278 = vmul.f32 %v234, 1.442695
  %v279 = vpow.pop %v278
  %v280 = vmul.f32 %v235, 1.442695
  %v281 = vpow.pop %v280
  %v282 = vmul.f32 %v236, 1.442695
  %v283 = vpow.pop %v282
  %v284 = vmul.f32 %v237, 1.442695
  %v285 = vpow.pop %v284
  %v286 = vmul.f32 %v238, 1.442695
  %v287 = vpow.pop %v286
  %v288 = vmul.f32 %v239, 1.442695
  %v289 = vpow.pop %v288
  %v290 = vmul.f32 %v240, 1.442695
  %v291 = vpow.pop %v290
  %v292 = vmul.f32 %v241, 1.442695
  %v293 = vpow.pop %v292
  %v294 = vmul.f32 %v242, 1.442695
  %v295 = vpow.pop %v294
  %v296 = vmul.f32 %v243, 1.442695
  %v297 = vpow.pop %v296
  %v298 = vmul.f32 %v244, 1.442695
  %v299 = vpow.pop %v298
  %v300 = vmul.f32 %v245, 1.442695
  %v301 = vpow.pop %v300
  %v302 = vmul.f32 %v246, 1.442695
  %v303 = vpow.pop %v302
  %v304 = vmul.f32 %v247, 1.442695
  %v305 = vpow.pop %v304
  %v306 = vmul.f32 %v248, 1.442695
  %v307 = vpow.pop %v306
  %v308 = vmul.f32 %v249, 1.442695
  %v309 = vpow.pop %v308
  %v310 = vmul.f32 %v250, 1.442695
  %v311 = vpow.pop %v310
  %v312 = vmul.f32 %v251, 1.442695
  %v313 = vpow.pop %v312
  %v314 = vmul.f32 %v252, 1.442695
  %v315 = vpow.pop %v314
  %v316 = vmul.f32 %v253, 1.442695
  %v317 = vpow.pop %v316
  %v318 = vmul.f32 %v254, 1.442695
  %v319 = vpow.pop %v318
  %v320 = vmul.f32 %v255, 1.442695
  %v321 = vpow.pop %v320
  %v322 = vmul.f32 %v256, 1.442695
  %v323 = vpow.pop %v322
  %v324 = vmul.f32 %v257, 1.442695
  %v325 = vpow.pop %v324
  %v326 = vmul.f32 %v258, 1.442695
  %v327 = vpow.pop %v326
  %v328 = vmul.f32 %v259, 1.442695
  %v329 = vpow.pop %v328
  %v330 = vmul.f32 %v260, 1.442695
  %v331 = vpow.pop %v330
  %v332 = vmul.f32 %v261, 1.442695
  %v333 = vpow.pop %v332
  %v334 = vmul.f32 %v262, 1.442695
  %v335 = vpow.pop %v334
  %v336 = vmul.f32 %v263, 1.442695
  %v337 = vpow.pop %v336
  %v338 = vmul.f32 %v264, 1.442695
  %v339 = vpow.pop %v338
  %v340 = vmul.f32 %v265, 1.442695
  %v341 = vpow.pop %v340
  %v342 = vmul.f32 %v266, 1.442695
  %v343 = vpow.pop %v342
  %v344 = vmul.f32 %v267, 1.442695
  %v345 = vpow.pop %v344
  %v346 = vmul.f32 %v268, 1.442695
  %v347 = vpow.pop %v346
  %v348 = vmul.f32 %v269, 1.442695
  %v349 = vpow.pop %v348
  %v350 = vmul.f32 %v270, 1.442695
  %v351 = vpow.pop %v350
  %v352 = vmul.f32 %v271, 1.442695
  %v353 = vpow.pop %v352
  %v354 = vmul.f32 %v272, 1.442695
  %v355 = vpow.pop %v354
  %v356 = vmul.f32 %v273, 1.442695
  %v357 = vpow.pop %v356
  %v358 = vadd.f32 %v275, 1.0
  %v359 = vadd.f32 %v277, 1.0
  %v360 = vadd.f32 %v279, 1.0
  %v361 = vadd.f32 %v281, 1.0
  %v362 = vadd.f32 %v283, 1.0
  %v363 = vadd.f32 %v285, 1.0
  %v364 = vadd.f32 %v287, 1.0
  %v365 = vadd.f32 %v289, 1.0
  %v366 = vadd.f32 %v291, 1.0
  %v367 = vadd.f32 %v293, 1.0
  %v368 = vadd.f32 %v295, 1.0
  %v369 = vadd.f32 %v297, 1.0
  %v370 = vadd.f32 %v299, 1.0
  %v371 = vadd.f32 %v301, 1.0
  %v372 = vadd.f32 %v303, 1.0
  %v373 = vadd.f32 %v305, 1.0
  %v374 = vadd.f32 %v307, 1.0
  %v375 = vadd.f32 %v309, 1.0
  %v376 = vadd.f32 %v311, 1.0
  %v377 = vadd.f32 %v313, 1.0
  %v378 = vadd.f32 %v315, 1.0
  %v379 = vadd.f32 %v317, 1.0
  %v380 = vadd.f32 %v319, 1.0
  %v381 = vadd.f32 %v321, 1.0
  %v382 = vadd.f32 %v323, 1.0
  %v383 = vadd.f32 %v325, 1.0
  %v384 = vadd.f32 %v327, 1.0
  %v385 = vadd.f32 %v329, 1.0
  %v386 = vadd.f32 %v331, 1.0
  %v387 = vadd.f32 %v333, 1.0
  %v388 = vadd.f32 %v335, 1.0
  %v389 = vadd.f32 %v337, 1.0
  %v390 = vadd.f32 %v339, 1.0
  %v391 = vadd.f32 %v341, 1.0
  %v392 = vadd.f32 %v343, 1.0
  %v393 = vadd.f32 %v345, 1.0
  %v394 = vadd.f32 %v347, 1.0
  %v395 = vadd.f32 %v349, 1.0
  %v396 = vadd.f32 %v351, 1.0
  %v397 = vadd.f32 %v353, 1.0
  %v398 = vadd.f32 %v355, 1.0
  %v399 = vadd.f32 %v357, 1.0
  %v400 = vrcp.pop %v358
  %v401 = vmul.f32 1.0, %v400
  %v402 = vrcp.pop %v359
  %v403 = vmul.f32 1.0, %v402
  %v404 = vrcp.pop %v360
  %v405 = vmul.f32 1.0, %v404
  %v406 = vrcp.pop %v361
  %v407 = vmul.f32 1.0, %v406
  %v408 = vrcp.pop %v362
  %v409 = vmul.f32 1.0, %v408
  %v410 = vrcp.pop %v363
  %v411 = vmul.f32 1.0, %v410
  %v412 = vrcp.pop %v364
  %v413 = vmul.f32 1.0, %v412
  %v414 = vrcp.pop %v365
  %v415 = vmul.f32 1.0, %v414
  %v416 = vrcp.pop %v366
  %v417 = vmul.f32 1.0, %v416
  %v418 = vrcp.pop %v367
  %v419 = vmul.f32 1.0, %v418
  %v420 = vrcp.pop %v368
  %v421 = vmul.f32 1.0, %v420
  %v422 = vrcp.pop %v369
  %v423 = vmul.f32 1.0, %v422
  %v424 = vrcp.pop %v370
  %v425 = vmul.f32 1.0, %v424
  %v426 = vrcp.pop %v371
  %v427 = vmul.f32 1.0, %v426
  %v428 = vrcp.pop %v372
  %v429 = vmul.f32 1.0, %v428
  %v430 = vrcp.pop %v373
  %v431 = vmul.f32 1.0, %v430
  %v432 = vrcp.pop %v374
  %v433 = vmul.f32 1.0, %v432
  %v434 = vrcp.pop %v375
  %v435 = vmul.f32 1.0, %v434
  %v436 = vrcp.pop %v376
  %v437 = vmul.f32 1.0, %v436
  %v438 = vrcp.pop %v377
  %v439 = vmul.f32 1.0, %v438
  %v440 = vrcp.pop %v378
  %v441 = vmul.f32 1.0, %v440
  %v442 = vrcp.pop %v379
  %v443 = vmul.f32 1.0, %v442
  %v444 = vrcp.pop %v380
  %v445 = vmul.f32 1.0, %v444
  %v446 = vrcp.pop %v381
  %v447 = vmul.f32 1.0, %v446
  %v448 = vrcp.pop %v382
  %v449 = vmul.f32 1.0, %v448
  %v450 = vrcp.pop %v383
  %v451 = vmul.f32 1.0, %v450
  %v452 = vrcp.pop %v384
  %v453 = vmul.f32 1.0, %v452
  %v454 = vrcp.pop %v385
  %v455 = vmul.f32 1.0, %v454
  %v456 = vrcp.pop %v386
  %v457 = vmul.f32 1.0, %v456
  %v458 = vrcp.pop %v387
  %v459 = vmul.f32 1.0, %v458
  %v460 = vrcp.pop %v388
  %v461 = vmul.f32 1.0, %v460
  %v462 = vrcp.pop %v389
  %v463 = vmul.f32 1.0, %v462
  %v464 = vrcp.pop %v390
  %v465 = vmul.f32 1.0, %v464
  %v466 = vrcp.pop %v391
  %v467 = vmul.f32 1.0, %v466
  %v468 = vrcp.pop %v392
  %v469 = vmul.f32 1.0, %v468
  %v470 = vrcp.pop %v393
  %v471 = vmul.f32 1.0, %v470
  %v472 = vrcp.pop %v394
  %v473 = vmul.f32 1.0, %v472
  %v474 = vrcp.pop %v395
  %v475 = vmul.f32 1.0, %v474
  %v476 = vrcp.pop %v396
  %v477 = vmul.f32 1.0, %v476
  %v478 = vrcp.pop %v397
  %v479 = vmul.f32 1.0, %v478
  %v480 = vrcp.pop %v398
  %v481 = vmul.f32 1.0, %v480
  %v482 = vrcp.pop %v399
  %v483 = vmul.f32 1.0, %v482
  %v484 = vld [vmem:[%s2] sm:$0xff]
  %v485 = vld [vmem:[%s2 + $0x8] sm:$0xff]
  %v486 = vld [vmem:[%s2 + $0x10] sm:$0xff]
  %v487 = vld [vmem:[%s2 + $0x18] sm:$0xff]
  %v488 = vld [vmem:[%s2 + $0x20] sm:$0xff]
  %v489 = vld [vmem:[%s2 + $0x28] sm:$0xff]
  %v490 = vld [vmem:[%s2 + $0x30] sm:$0xff]
  %v491 = vld [vmem:[%s2 + $0x38] sm:$0xff]
  %v492 = vld [vmem:[%s2 + $0x40] sm:$0xff]
  %v493 = vld [vmem:[%s2 + $0x48] sm:$0xff]
  %v494 = vld [vmem:[%s2 + $0x50] sm:$0xff]
  %v495 = vld [vmem:[%s2 + $0x58] sm:$0xff]
  %v496 = vld [vmem:[%s2 + $0x60] sm:$0xff]
  %v497 = vld [vmem:[%s2 + $0x68] sm:$0xff]
  %v498 = vld [vmem:[%s2 + $0x70] sm:$0xff]
  %v499 = vld [vmem:[%s2 + $0x78] sm:$0xff]
  %v500 = vld [vmem:[%s2 + $0x80] sm:$0xff]
  %v501 = vld [vmem:[%s2 + $0x88] sm:$0xff]
  %v502 = vld [vmem:[%s2 + $0x90] sm:$0xff]
  %v503 = vld [vmem:[%s2 + $0x98] sm:$0xff]
  %v504 = vld [vmem:[%s2 + $0xa0] sm:$0xff]
  %v505 = vld [vmem:[%s2 + $0xa8] sm:$0xff]
  %v506 = vld [vmem:[%s2 + $0xb0] sm:$0xff]
  %v507 = vld [vmem:[%s2 + $0xb8] sm:$0xff]
  %v508 = vld [vmem:[%s2 + $0xc0] sm:$0xff]
  %v509 = vld [vmem:[%s2 + $0xc8] sm:$0xff]
  %v510 = vld [vmem:[%s2 + $0xd0] sm:$0xff]
  %v511 = vld [vmem:[%s2 + $0xd8] sm:$0xff]
  %v512 = vld [vmem:[%s2 + $0xe0] sm:$0xff]
  %v513 = vld [vmem:[%s2 + $0xe8] sm:$0xff]
  %v514 = vld [vmem:[%s2 + $0xf0] sm:$0xff]
  %v515 = vld [vmem:[%s2 + $0xf8] sm:$0xff]
  %v516 = vld [vmem:[%s2 + $0x100] sm:$0xff]
  %v517 = vld [vmem:[%s2 + $0x108] sm:$0xff]
  %v518 = vld [vmem:[%s2 + $0x110] sm:$0xff]
  %v519 = vld [vmem:[%s2 + $0x118] sm:$0xff]
  %v520 = vld [vmem:[%s2 + $0x120] sm:$0xff]
  %v521 = vld [vmem:[%s2 + $0x128] sm:$0xff]
  %v522 = vld [vmem:[%s2 + $0x130] sm:$0xff]
  %v523 = vld [vmem:[%s2 + $0x138] sm:$0xff]
  %v524 = vld [vmem:[%s2 + $0x140] sm:$0xff]
  %v525 = vld [vmem:[%s2 + $0x148] sm:$0xff]
  %v526 = vld [vmem:[%s2 + $0x150] sm:$0xff]
  %v527 = vld [vmem:[%s2 + $0x158] sm:$0xff]
  %v528 = vld [vmem:[%s2 + $0x160] sm:$0xff]
  %v529 = vld [vmem:[%s2 + $0x168] sm:$0xff]
  %v530 = vld [vmem:[%s2 + $0x170] sm:$0xff]
  %v531 = vld [vmem:[%s2 + $0x178] sm:$0xff]
  %v532 = vld [vmem:[%s2 + $0x180] sm:$0xff]
  %v533 = vld [vmem:[%s2 + $0x188] sm:$0xff]
  %v534 = vld [vmem:[%s2 + $0x190] sm:$0xff]
  %v535 = vld [vmem:[%s2 + $0x198] sm:$0xff]
  %v536 = vld [vmem:[%s2 + $0x1a0] sm:$0xff]
  %v537 = vld [vmem:[%s2 + $0x1a8] sm:$0xff]
  %v538 = vld [vmem:[%s2 + $0x1b0] sm:$0xff]
  %v539 = vld [vmem:[%s2 + $0x1b8] sm:$0xff]
  %v540 = vld [vmem:[%s2 + $0x1c0] sm:$0xff]
  %v541 = vld [vmem:[%s2 + $0x1c8] sm:$0xff]
  %v542 = vld [vmem:[%s2 + $0x1d0] sm:$0xff]
  %v543 = vld [vmem:[%s2 + $0x1d8] sm:$0xff]
  %v544 = vld [vmem:[%s2 + $0x1e0] sm:$0xff]
  %v545 = vld [vmem:[%s2 + $0x1e8] sm:$0xff]
  %v546 = vld [vmem:[%s2 + $0x1f0] sm:$0xff]
  %v547 = vld [vmem:[%s2 + $0x1f8] sm:$0xff]
  %v548 = vld [vmem:[%s2 + $0x200] sm:$0xff]
  %v549 = vld [vmem:[%s2 + $0x208] sm:$0xff]
  %v550 = vld [vmem:[%s2 + $0x210] sm:$0xff]
  %v551 = vld [vmem:[%s2 + $0x218] sm:$0xff]
  %v552 = vld [vmem:[%s2 + $0x220] sm:$0xff]
  %v553 = vld [vmem:[%s2 + $0x228] sm:$0xff]
  %v554 = vld [vmem:[%s2 + $0x230] sm:$0xff]
  %v555 = vld [vmem:[%s2 + $0x238] sm:$0xff]
  %v556 = vld [vmem:[%s2 + $0x240] sm:$0xff]
  %v557 = vld [vmem:[%s2 + $0x248] sm:$0xff]
  %v558 = vld [vmem:[%s2 + $0x250] sm:$0xff]
  %v559 = vld [vmem:[%s2 + $0x258] sm:$0xff]
  %v560 = vld [vmem:[%s2 + $0x260] sm:$0xff]
  %v561 = vld [vmem:[%s2 + $0x268] sm:$0xff]
  %v562 = vld [vmem:[%s2 + $0x270] sm:$0xff]
  %v563 = vld [vmem:[%s2 + $0x278] sm:$0xff]
  %v564 = vld [vmem:[%s2 + $0x280] sm:$0xff]
  %v565 = vld [vmem:[%s2 + $0x288] sm:$0xff]
  %v566 = vld [vmem:[%s2 + $0x290] sm:$0xff]
  %v567 = vld [vmem:[%s2 + $0x298] sm:$0xff]
  %v568 = vmul.f32 %v484, %v401
  %v569 = vmul.f32 %v485, %v401
  %v570 = vmul.f32 %v486, %v403
  %v571 = vmul.f32 %v487, %v403
  %v572 = vmul.f32 %v488, %v405
  %v573 = vmul.f32 %v489, %v405
  %v574 = vmul.f32 %v490, %v407
  %v575 = vmul.f32 %v491, %v407
  %v576 = vmul.f32 %v492, %v409
  %v577 = vmul.f32 %v493, %v409
  %v578 = vmul.f32 %v494, %v411
  %v579 = vmul.f32 %v495, %v411
  %v580 = vmul.f32 %v496, %v413
  %v581 = vmul.f32 %v497, %v413
  %v582 = vmul.f32 %v498, %v415
  %v583 = vmul.f32 %v499, %v415
  %v584 = vmul.f32 %v500, %v417
  %v585 = vmul.f32 %v501, %v417
  %v586 = vmul.f32 %v502, %v419
  %v587 = vmul.f32 %v503, %v419
  %v588 = vmul.f32 %v504, %v421
  %v589 = vmul.f32 %v505, %v421
  %v590 = vmul.f32 %v506, %v423
  %v591 = vmul.f32 %v507, %v423
  %v592 = vmul.f32 %v508, %v425
  %v593 = vmul.f32 %v509, %v425
  %v594 = vmul.f32 %v510, %v427
  %v595 = vmul.f32 %v511, %v427
  %v596 = vmul.f32 %v512, %v429
  %v597 = vmul.f32 %v513, %v429
  %v598 = vmul.f32 %v514, %v431
  %v599 = vmul.f32 %v515, %v431
  %v600 = vmul.f32 %v516, %v433
  %v601 = vmul.f32 %v517, %v433
  %v602 = vmul.f32 %v518, %v435
  %v603 = vmul.f32 %v519, %v435
  %v604 = vmul.f32 %v520, %v437
  %v605 = vmul.f32 %v521, %v437
  %v606 = vmul.f32 %v522, %v439
  %v607 = vmul.f32 %v523, %v439
  %v608 = vmul.f32 %v524, %v441
  %v609 = vmul.f32 %v525, %v441
  %v610 = vmul.f32 %v526, %v443
  %v611 = vmul.f32 %v527, %v443
  %v612 = vmul.f32 %v528, %v445
  %v613 = vmul.f32 %v529, %v445
  %v614 = vmul.f32 %v530, %v447
  %v615 = vmul.f32 %v531, %v447
  %v616 = vmul.f32 %v532, %v449
  %v617 = vmul.f32 %v533, %v449
  %v618 = vmul.f32 %v534, %v451
  %v619 = vmul.f32 %v535, %v451
  %v620 = vmul.f32 %v536, %v453
  %v621 = vmul.f32 %v537, %v453
  %v622 = vmul.f32 %v538, %v455
  %v623 = vmul.f32 %v539, %v455
  %v624 = vmul.f32 %v540, %v457
  %v625 = vmul.f32 %v541, %v457
  %v626 = vmul.f32 %v542, %v459
  %v627 = vmul.f32 %v543, %v459
  %v628 = vmul.f32 %v544, %v461
  %v629 = vmul.f32 %v545, %v461
  %v630 = vmul.f32 %v546, %v463
  %v631 = vmul.f32 %v547, %v463
  %v632 = vmul.f32 %v548, %v465
  %v633 = vmul.f32 %v549, %v465
  %v634 = vmul.f32 %v550, %v467
  %v635 = vmul.f32 %v551, %v467
  %v636 = vmul.f32 %v552, %v469
  %v637 = vmul.f32 %v553, %v469
  %v638 = vmul.f32 %v554, %v471
  %v639 = vmul.f32 %v555, %v471
  %v640 = vmul.f32 %v556, %v473
  %v641 = vmul.f32 %v557, %v473
  %v642 = vmul.f32 %v558, %v475
  %v643 = vmul.f32 %v559, %v475
  %v644 = vmul.f32 %v560, %v477
  %v645 = vmul.f32 %v561, %v477
  %v646 = vmul.f32 %v562, %v479
  %v647 = vmul.f32 %v563, %v479
  %v648 = vmul.f32 %v564, %v481
  %v649 = vmul.f32 %v565, %v481
  %v650 = vmul.f32 %v566, %v483
  %v651 = vmul.f32 %v567, %v483
  %652 = vst [vmem:[%s3] sm:$0xff] %v568
  %vm653 = vcmask 556032
  %654 = vst.msk [vmem:[%s3 + $0x8] sm:$0xff] %vm653, %v569
  %655 = vst [vmem:[%s3 + $0x10] sm:$0xff] %v570
  %656 = vst.msk [vmem:[%s3 + $0x18] sm:$0xff] %vm653, %v571
  %657 = vst [vmem:[%s3 + $0x20] sm:$0xff] %v572
  %658 = vst.msk [vmem:[%s3 + $0x28] sm:$0xff] %vm653, %v573
  %659 = vst [vmem:[%s3 + $0x30] sm:$0xff] %v574
  %660 = vst.msk [vmem:[%s3 + $0x38] sm:$0xff] %vm653, %v575
  %661 = vst [vmem:[%s3 + $0x40] sm:$0xff] %v576
  %662 = vst.msk [vmem:[%s3 + $0x48] sm:$0xff] %vm653, %v577
  %663 = vst [vmem:[%s3 + $0x50] sm:$0xff] %v578
  %664 = vst.msk [vmem:[%s3 + $0x58] sm:$0xff] %vm653, %v579
  %665 = vst [vmem:[%s3 + $0x60] sm:$0xff] %v580
  %666 = vst.msk [vmem:[%s3 + $0x68] sm:$0xff] %vm653, %v581
  %667 = vst [vmem:[%s3 + $0x70] sm:$0xff] %v582
  %668 = vst.msk [vmem:[%s3 + $0x78] sm:$0xff] %vm653, %v583
  %669 = vst [vmem:[%s3 + $0x80] sm:$0xff] %v584
  %670 = vst.msk [vmem:[%s3 + $0x88] sm:$0xff] %vm653, %v585
  %671 = vst [vmem:[%s3 + $0x90] sm:$0xff] %v586
  %672 = vst.msk [vmem:[%s3 + $0x98] sm:$0xff] %vm653, %v587
  %673 = vst [vmem:[%s3 + $0xa0] sm:$0xff] %v588
  %674 = vst.msk [vmem:[%s3 + $0xa8] sm:$0xff] %vm653, %v589
  %675 = vst [vmem:[%s3 + $0xb0] sm:$0xff] %v590
  %676 = vst.msk [vmem:[%s3 + $0xb8] sm:$0xff] %vm653, %v591
  %677 = vst [vmem:[%s3 + $0xc0] sm:$0xff] %v592
  %678 = vst.msk [vmem:[%s3 + $0xc8] sm:$0xff] %vm653, %v593
  %679 = vst [vmem:[%s3 + $0xd0] sm:$0xff] %v594
  %680 = vst.msk [vmem:[%s3 + $0xd8] sm:$0xff] %vm653, %v595
  %681 = vst [vmem:[%s3 + $0xe0] sm:$0xff] %v596
  %682 = vst.msk [vmem:[%s3 + $0xe8] sm:$0xff] %vm653, %v597
  %683 = vst [vmem:[%s3 + $0xf0] sm:$0xff] %v598
  %684 = vst.msk [vmem:[%s3 + $0xf8] sm:$0xff] %vm653, %v599
  %685 = vst [vmem:[%s3 + $0x100] sm:$0xff] %v600
  %686 = vst.msk [vmem:[%s3 + $0x108] sm:$0xff] %vm653, %v601
  %687 = vst [vmem:[%s3 + $0x110] sm:$0xff] %v602
  %688 = vst.msk [vmem:[%s3 + $0x118] sm:$0xff] %vm653, %v603
  %689 = vst [vmem:[%s3 + $0x120] sm:$0xff] %v604
  %690 = vst.msk [vmem:[%s3 + $0x128] sm:$0xff] %vm653, %v605
  %691 = vst [vmem:[%s3 + $0x130] sm:$0xff] %v606
  %692 = vst.msk [vmem:[%s3 + $0x138] sm:$0xff] %vm653, %v607
  %693 = vst [vmem:[%s3 + $0x140] sm:$0xff] %v608
  %694 = vst.msk [vmem:[%s3 + $0x148] sm:$0xff] %vm653, %v609
  %695 = vst [vmem:[%s3 + $0x150] sm:$0xff] %v610
  %696 = vst.msk [vmem:[%s3 + $0x158] sm:$0xff] %vm653, %v611
  %697 = vst [vmem:[%s3 + $0x160] sm:$0xff] %v612
  %698 = vst.msk [vmem:[%s3 + $0x168] sm:$0xff] %vm653, %v613
  %699 = vst [vmem:[%s3 + $0x170] sm:$0xff] %v614
  %700 = vst.msk [vmem:[%s3 + $0x178] sm:$0xff] %vm653, %v615
  %701 = vst [vmem:[%s3 + $0x180] sm:$0xff] %v616
  %702 = vst.msk [vmem:[%s3 + $0x188] sm:$0xff] %vm653, %v617
  %703 = vst [vmem:[%s3 + $0x190] sm:$0xff] %v618
  %704 = vst.msk [vmem:[%s3 + $0x198] sm:$0xff] %vm653, %v619
  %705 = vst [vmem:[%s3 + $0x1a0] sm:$0xff] %v620
  %706 = vst.msk [vmem:[%s3 + $0x1a8] sm:$0xff] %vm653, %v621
  %707 = vst [vmem:[%s3 + $0x1b0] sm:$0xff] %v622
  %708 = vst.msk [vmem:[%s3 + $0x1b8] sm:$0xff] %vm653, %v623
  %709 = vst [vmem:[%s3 + $0x1c0] sm:$0xff] %v624
  %710 = vst.msk [vmem:[%s3 + $0x1c8] sm:$0xff] %vm653, %v625
  %711 = vst [vmem:[%s3 + $0x1d0] sm:$0xff] %v626
  %712 = vst.msk [vmem:[%s3 + $0x1d8] sm:$0xff] %vm653, %v627
  %713 = vst [vmem:[%s3 + $0x1e0] sm:$0xff] %v628
  %714 = vst.msk [vmem:[%s3 + $0x1e8] sm:$0xff] %vm653, %v629
  %715 = vst [vmem:[%s3 + $0x1f0] sm:$0xff] %v630
  %716 = vst.msk [vmem:[%s3 + $0x1f8] sm:$0xff] %vm653, %v631
  %717 = vst [vmem:[%s3 + $0x200] sm:$0xff] %v632
  %718 = vst.msk [vmem:[%s3 + $0x208] sm:$0xff] %vm653, %v633
  %719 = vst [vmem:[%s3 + $0x210] sm:$0xff] %v634
  %720 = vst.msk [vmem:[%s3 + $0x218] sm:$0xff] %vm653, %v635
  %721 = vst [vmem:[%s3 + $0x220] sm:$0xff] %v636
  %722 = vst.msk [vmem:[%s3 + $0x228] sm:$0xff] %vm653, %v637
  %723 = vst [vmem:[%s3 + $0x230] sm:$0xff] %v638
  %724 = vst.msk [vmem:[%s3 + $0x238] sm:$0xff] %vm653, %v639
  %725 = vst [vmem:[%s3 + $0x240] sm:$0xff] %v640
  %726 = vst.msk [vmem:[%s3 + $0x248] sm:$0xff] %vm653, %v641
  %727 = vst [vmem:[%s3 + $0x250] sm:$0xff] %v642
  %728 = vst.msk [vmem:[%s3 + $0x258] sm:$0xff] %vm653, %v643
  %729 = vst [vmem:[%s3 + $0x260] sm:$0xff] %v644
  %730 = vst.msk [vmem:[%s3 + $0x268] sm:$0xff] %vm653, %v645
  %731 = vst [vmem:[%s3 + $0x270] sm:$0xff] %v646
  %732 = vst.msk [vmem:[%s3 + $0x278] sm:$0xff] %vm653, %v647
  %733 = vst [vmem:[%s3 + $0x280] sm:$0xff] %v648
  %734 = vst.msk [vmem:[%s3 + $0x288] sm:$0xff] %vm653, %v649
  %735 = vst [vmem:[%s3 + $0x290] sm:$0xff] %v650
  %736 = vst.msk [vmem:[%s3 + $0x298] sm:$0xff] %vm653, %v651
  // Predicated region
  $region14: #{se_gate.1} parent=0 // pred_check
    _
  $region15: #{se_gate.1} parent=0 // pred_check_branch
    %738 = sbr.rel (0) target = $region17
  $region16: #{se_gate.1} parent=0 // pred_region
    _
  $region17: #{se_gate.1} parent=0 // pred_fallthru
    _
  // Predicated region
  $region18: #{se_gate.1} parent=0 // pred_check
    _
  $region19: #{se_gate.1} parent=0 // pred_check_branch
    %740 = sbr.rel (0) target = $region21
  $region20: #{se_gate.1} parent=0 // pred_region
    _
  $region21: #{se_gate.1} parent=0 // pred_fallthru
    _

</llo_original>
